<compile_context>
chip_gen: v5e
topology: v5e:2x2
jax: 0.10.0
libtpu: 0.0.40
codegen_flags: <defaults>
</compile_context>

<pallas_src>
import functools

import jax
import jax.numpy as jnp
from jax.experimental import pallas as pl
from jax.experimental.pallas import tpu as pltpu

PIXEL_MEAN = jnp.array([0.485, 0.456, 0.406], dtype=jnp.float32)
PIXEL_STD = jnp.array([0.229, 0.224, 0.225], dtype=jnp.float32)

CONV_FILTERS = 32   # stem conv output channels (OSNet uses 64; small here)
EMBED_DIM = 32      # ReID feature dimension (OSNet uses 512; small here)
KSIZE = 3
LANE = 128          # TPU lane width: F / E padded up to this for dense stores
K_PAD = 32          # C*K*K = 27 padded up for MXU/DMA friendliness


def _round_up(x, m):
    return (x + m - 1) // m * m


def _pick_tile_rows(hw, max_rows):
    """Largest spatial-row tile that divides hw and is a multiple of 8
    (or equals hw itself)."""
    for t in range(min(hw, max_rows), 0, -1):
        if hw % t == 0 and (t % 8 == 0 or t == hw):
            return t
    return hw


# --------------------------------------------------------------------------
# Fused Pallas kernel: conv stem (im2col matmul + bias + ReLU) -> GAP -> FC
# --------------------------------------------------------------------------
def _fused_stem_gap_fc_kernel(inv_hw, p_ref, w_ref, cb_ref, fcw_ref, fcb_ref,
                              o_ref, acc_ref):
    """Grid = (image n, spatial tile s).

    acc_ref is a per-image (1, Fp) f32 accumulator holding
    sum_{spatial} ReLU(patches @ W_folded + b_folded)."""
    s = pl.program_id(1)

    @pl.when(s == 0)
    def _init():
        acc_ref[...] = jnp.zeros_like(acc_ref)

    patches = p_ref[0]                                     # (TM, Kp) bf16
    y = jnp.dot(patches, w_ref[...],
                preferred_element_type=jnp.float32)        # (TM, Fp) on MXU
    y = jnp.maximum(y + cb_ref[...], 0.0)                  # bias + ReLU
    acc_ref[...] += jnp.sum(y, axis=0, keepdims=True)      # partial GAP sum

    @pl.when(s == pl.num_programs(1) - 1)
    def _finalize():
        pooled = acc_ref[...] * inv_hw                     # (1, Fp) mean
        feat = jnp.dot(pooled, fcw_ref[...],
                       preferred_element_type=jnp.float32) + fcb_ref[...]
        o_ref[0] = feat                                    # (1, Ep)


# --------------------------------------------------------------------------
# Plain-JAX glue: parameter folding + im2col patch extraction
# --------------------------------------------------------------------------
def _fold_normalization(conv_w, conv_b):
    """Fold  norm(x) = x/(255*std) - mean/std  into the linear conv stem."""
    a = (1.0 / (255.0 * PIXEL_STD)).astype(jnp.float32)          # (C,)
    b = (-PIXEL_MEAN / PIXEL_STD).astype(jnp.float32)            # (C,)
    w_folded = conv_w * a[None, :, None, None]                   # (F,C,K,K)
    b_folded = conv_b + jnp.einsum("fchw,c->f", conv_w, b)       # (F,)
    return w_folded, b_folded


def _extract_patches(x_nchw):
    """im2col on the RAW image, border-padded with 255*mean_c per channel so
    the folded conv sees exactly zero padding in normalized space (matching
    T.Normalize -> Conv2d(padding=1))."""
    N, C, H, W = x_nchw.shape
    pad_val = (255.0 * PIXEL_MEAN).reshape(1, C, 1, 1)
    x_pad = jnp.pad(x_nchw, ((0, 0), (0, 0), (1, 1), (1, 1)))
    interior = jnp.pad(jnp.ones((1, 1, H, W), x_nchw.dtype),
                       ((0, 0), (0, 0), (1, 1), (1, 1)))
    x_pad = x_pad + (1.0 - interior) * pad_val
    patches = jax.lax.conv_general_dilated_patches(
        x_pad, filter_shape=(KSIZE, KSIZE), window_strides=(1, 1),
        padding="VALID",
        dimension_numbers=("NCHW", "OIHW", "NCHW"))    # (N, C*K*K, H, W)
    # The patch-channel axis is (C, kh, kw)-major, matching
    # conv_w.reshape(F, C*K*K).  Verified numerically against the pure-JAX
    # reference in __main__.
    ckk = C * KSIZE * KSIZE
    return patches.transpose(0, 2, 3, 1).reshape(N, H * W, ckk)


# --------------------------------------------------------------------------
# Module-equivalent wrapper
# --------------------------------------------------------------------------
def init_reid_params(key, in_channels=3):
    k1, k2, k3, k4 = jax.random.split(key, 4)
    return {
        "conv_w": 0.1 * jax.random.normal(
            k1, (CONV_FILTERS, in_channels, KSIZE, KSIZE), jnp.float32),
        "conv_b": 0.01 * jax.random.normal(k2, (CONV_FILTERS,), jnp.float32),
        "fc_w": 0.1 * jax.random.normal(
            k3, (CONV_FILTERS, EMBED_DIM), jnp.float32),
        "fc_b": 0.01 * jax.random.normal(k4, (EMBED_DIM,), jnp.float32),
    }


def reid_forward(params, im_batch_nchw, *, tile_rows=1024,
                 compute_dtype=jnp.bfloat16):
    """ReIDDetectMultiBackend.forward:
    normalize (folded into conv) -> conv stem + ReLU -> GAP -> FC -> features
    """
    x = im_batch_nchw.astype(jnp.float32)
    N, C, H, W = x.shape
    HW = H * W
    F, E = CONV_FILTERS, EMBED_DIM
    ckk = C * KSIZE * KSIZE
    Kp = max(K_PAD, _round_up(ckk, 8))
    Fp = _round_up(F, LANE)
    Ep = _round_up(E, LANE)

    # ---- one-time parameter transforms (plain JAX glue) -------------------
    w_folded, b_folded = _fold_normalization(params["conv_w"],
                                             params["conv_b"])
    w2d = jnp.zeros((Kp, Fp), jnp.float32).at[:ckk, :F].set(
        w_folded.reshape(F, ckk).T).astype(compute_dtype)        # (Kp, Fp)
    cb2d = jnp.zeros((1, Fp), jnp.float32).at[:, :F].set(b_folded[None, :])
    fcw = jnp.zeros((Fp, Ep), jnp.float32).at[:F, :E].set(params["fc_w"])
    fcb = jnp.zeros((1, Ep), jnp.float32).at[:, :E].set(params["fc_b"][None, :])

    # ---- im2col patches (lane-padded K, bf16) -----------------------------
    patches = _extract_patches(x)                                # (N, HW, ckk)
    patches = jnp.pad(patches, ((0, 0), (0, 0), (0, Kp - ckk)))
    patches = patches.astype(compute_dtype)                      # (N, HW, Kp)

    tm = _pick_tile_rows(HW, tile_rows)
    n_s = HW // tm
    inv_hw = 1.0 / float(HW)

    kernel = functools.partial(_fused_stem_gap_fc_kernel, inv_hw)

    out = pl.pallas_call(
        kernel,
        out_shape=jax.ShapeDtypeStruct((N, 1, Ep), jnp.float32),
        grid_spec=pltpu.PrefetchScalarGridSpec(
            num_scalar_prefetch=0,
            grid=(N, n_s),
            in_specs=[
                pl.BlockSpec((1, tm, Kp), lambda n, s: (n, s, 0)),   # patches
                pl.BlockSpec((Kp, Fp), lambda n, s: (0, 0)),         # conv W
                pl.BlockSpec((1, Fp), lambda n, s: (0, 0)),          # conv b
                pl.BlockSpec((Fp, Ep), lambda n, s: (0, 0)),         # fc W
                pl.BlockSpec((1, Ep), lambda n, s: (0, 0)),          # fc b
            ],
            out_specs=pl.BlockSpec((1, 1, Ep), lambda n, s: (n, 0, 0)),
            scratch_shapes=[pltpu.VMEM((1, Fp), jnp.float32)],
        ),
        compiler_params=pltpu.CompilerParams(
            dimension_semantics=("parallel", "arbitrary"),
            vmem_limit_bytes=32 * 1024 * 1024,
        ),
    )(patches, w2d, cb2d, fcw, fcb)

    return out[:, 0, :E]                                         # (N, E)


# --------------------------------------------------------------------------
# Pure-JAX reference (mirrors the PyTorch forward) for numeric validation
# --------------------------------------------------------------------------
def reid_forward_reference(params, im_batch_nchw):
    x = im_batch_nchw.astype(jnp.float32)
    N, C, H, W = x.shape
    xn = (x / 255.0 - PIXEL_MEAN.reshape(1, C, 1, 1)) \
        / PIXEL_STD.reshape(1, C, 1, 1)
    y = jax.lax.conv_general_dilated(
        xn, params["conv_w"], (1, 1), "SAME",
        dimension_numbers=("NCHW", "OIHW", "NCHW"))
    y = jnp.maximum(y + params["conv_b"].reshape(1, -1, 1, 1), 0.0)
    pooled = y.mean(axis=(2, 3))                                 # (N, F)
    return pooled @ params["fc_w"] + params["fc_b"]


if __name__ == "__main__":
    key = jax.random.PRNGKey(0)
    k_img, k_par = jax.random.split(key)

    # small shapes: batch=2, RGB, 16x8 spatial (matches the 256x128 aspect)
    N, C, H, W = 2, 3, 16, 8
    # simulate uint8 image values in [0, 255]
    im_batch = jax.random.uniform(
        k_img, (N, C, H, W), dtype=jnp.float32, minval=0.0, maxval=255.0)

    params = init_reid_params(k_par, in_channels=C)

    # tile_rows=64 -> 2 spatial tiles per image, exercising the accumulator
    # init / accumulate / finalize path of the fused kernel.
    features = reid_forward(params, im_batch, tile_rows=64)
    features = jax.block_until_ready(features)

    assert features.shape == (N, EMBED_DIM)
    assert features.dtype == jnp.float32

    ref = jax.block_until_ready(reid_forward_reference(params, im_batch))
    max_err = float(jnp.max(jnp.abs(features - ref)))
    assert jnp.allclose(features, ref, rtol=7.5e-2, atol=7.5e-2), max_err

    print("KERNEL_OK")
</pallas_src>

<mosaic_0001>
module attributes {stable_mosaic.version = 11 : i64} {
  func.func @_fused_stem_gap_fc_kernel(%arg0: i32, %arg1: i32, %arg2: memref<1x64x32xbf16, #tpu.memory_space<vmem>>, %arg3: memref<32x128xbf16, #tpu.memory_space<vmem>>, %arg4: memref<1x128xf32, #tpu.memory_space<vmem>>, %arg5: memref<128x128xf32, #tpu.memory_space<vmem>>, %arg6: memref<1x128xf32, #tpu.memory_space<vmem>>, %arg7: memref<1x1x128xf32, #tpu.memory_space<vmem>>, %arg8: memref<1x128xf32, #tpu.memory_space<vmem>>) attributes {dimension_semantics = [#tpu.dimension_semantics<parallel>, #tpu.dimension_semantics<arbitrary>], iteration_bounds = array<i64: 2, 2>, scalar_prefetch = 0 : i64, scratch_operands = 1 : i64, tpu.core_type = #tpu.core_type<tc>, window_params = [{transform_indices = @transform_0, window_bounds = array<i64: 1, 64, 32>}, {pipeline_mode = #tpu.pipeline_mode<synchronous>, transform_indices = @transform_1, window_bounds = array<i64: 32, 128>}, {pipeline_mode = #tpu.pipeline_mode<synchronous>, transform_indices = @transform_2, window_bounds = array<i64: 1, 128>}, {pipeline_mode = #tpu.pipeline_mode<synchronous>, transform_indices = @transform_3, window_bounds = array<i64: 128, 128>}, {pipeline_mode = #tpu.pipeline_mode<synchronous>, transform_indices = @transform_4, window_bounds = array<i64: 1, 128>}, {transform_indices = @transform_5, window_bounds = array<i64: 1, 1, 128>}]} {
    %c0_i32 = arith.constant 0 : i32
    %0 = arith.cmpi eq, %arg1, %c0_i32 : i32
    %1 = arith.extui %0 : i1 to i32
    %c0_i32_0 = arith.constant 0 : i32
    %2 = arith.cmpi ne, %1, %c0_i32_0 : i32
    scf.if %2 {
      %cst_14 = arith.constant 0.000000e+00 : f32
      %20 = vector.broadcast %cst_14 : f32 to vector<1x128xf32>
      %c0_15 = arith.constant 0 : index
      %c0_16 = arith.constant 0 : index
      %21 = vector.load %arg8[%c0_15, %c0_16] : memref<1x128xf32, #tpu.memory_space<vmem>>, vector<1x128xf32>
      tpu.vector_store %arg8[%c0_15, %c0_16], %20 {strides = array<i32>} : memref<1x128xf32, #tpu.memory_space<vmem>>, vector<1x128xf32>,
    } else {
    }
    %c0 = arith.constant 0 : index
    %c0_1 = arith.constant 0 : index
    %c0_2 = arith.constant 0 : index
    %3 = vector.load %arg2[%c0, %c0_1, %c0_2] : memref<1x64x32xbf16, #tpu.memory_space<vmem>>, vector<1x64x32xbf16>
    %4 = vector.shape_cast %3 : vector<1x64x32xbf16> to vector<64x32xbf16>
    %c0_3 = arith.constant 0 : index
    %c0_4 = arith.constant 0 : index
    %5 = vector.load %arg3[%c0_3, %c0_4] : memref<32x128xbf16, #tpu.memory_space<vmem>>, vector<32x128xbf16>
    %cst = arith.constant dense<0.000000e+00> : vector<64x128xf32>
    %6 = tpu.matmul %4, %5, %cst {dimension_numbers = #tpu.dot_dimension_numbers<[1], [0], [0], [1], [0, 0, 1, 1], [], []>} : vector<64x32xbf16>, vector<32x128xbf16>, vector<64x128xf32> -> vector<64x128xf32>
    %c0_5 = arith.constant 0 : index
    %c0_6 = arith.constant 0 : index
    %7 = vector.load %arg4[%c0_5, %c0_6] : memref<1x128xf32, #tpu.memory_space<vmem>>, vector<1x128xf32>
    %8 = vector.broadcast %7 : vector<1x128xf32> to vector<64x128xf32>
    %9 = arith.addf %6, %8 : vector<64x128xf32>
    %cst_7 = arith.constant 0.000000e+00 : f32
    %10 = vector.broadcast %cst_7 : f32 to vector<64x128xf32>
    %11 = arith.maximumf %9, %10 : vector<64x128xf32>
    %c0_8 = arith.constant 0 : index
    %c0_9 = arith.constant 0 : index
    %12 = vector.load %arg8[%c0_8, %c0_9] : memref<1x128xf32, #tpu.memory_space<vmem>>, vector<1x128xf32>
    %cst_10 = arith.constant dense<0.000000e+00> : vector<128xf32>
    %13 = vector.multi_reduction <add>, %11, %cst_10 [0] : vector<64x128xf32> to vector<128xf32>
    %14 = vector.shape_cast %13 : vector<128xf32> to vector<1x128xf32>
    %15 = arith.addf %12, %14 : vector<1x128xf32>
    %c0_11 = arith.constant 0 : index
    %c0_12 = arith.constant 0 : index
    %16 = vector.load %arg8[%c0_11, %c0_12] : memref<1x128xf32, #tpu.memory_space<vmem>>, vector<1x128xf32>
    tpu.vector_store %arg8[%c0_11, %c0_12], %15 {strides = array<i32>} : memref<1x128xf32, #tpu.memory_space<vmem>>, vector<1x128xf32>,
    %c1_i32 = arith.constant 1 : i32
    %17 = arith.cmpi eq, %arg1, %c1_i32 : i32
    %18 = arith.extui %17 : i1 to i32
    %c0_i32_13 = arith.constant 0 : i32
    %19 = arith.cmpi ne, %18, %c0_i32_13 : i32
    scf.if %19 {
      %c0_14 = arith.constant 0 : index
      %c0_15 = arith.constant 0 : index
      %20 = vector.load %arg8[%c0_14, %c0_15] : memref<1x128xf32, #tpu.memory_space<vmem>>, vector<1x128xf32>
      %cst_16 = arith.constant 7.812500e-03 : f32
      %21 = vector.broadcast %cst_16 : f32 to vector<1x128xf32>
      %22 = arith.mulf %20, %21 : vector<1x128xf32>
      %c0_17 = arith.constant 0 : index
      %c0_18 = arith.constant 0 : index
      %23 = vector.load %arg5[%c0_17, %c0_18] : memref<128x128xf32, #tpu.memory_space<vmem>>, vector<128x128xf32>
      %cst_19 = arith.constant dense<0.000000e+00> : vector<1x128xf32>
      %24 = tpu.matmul %22, %23, %cst_19 {dimension_numbers = #tpu.dot_dimension_numbers<[1], [0], [0], [1], [0, 0, 1, 1], [], []>} : vector<1x128xf32>, vector<128x128xf32>, vector<1x128xf32> -> vector<1x128xf32>
      %c0_20 = arith.constant 0 : index
      %c0_21 = arith.constant 0 : index
      %25 = vector.load %arg6[%c0_20, %c0_21] : memref<1x128xf32, #tpu.memory_space<vmem>>, vector<1x128xf32>
      %26 = arith.addf %24, %25 : vector<1x128xf32>
      %c0_22 = arith.constant 0 : index
      %c0_23 = arith.constant 0 : index
      %c0_24 = arith.constant 0 : index
      %27 = vector.load %arg7[%c0_22, %c0_23, %c0_24] : memref<1x1x128xf32, #tpu.memory_space<vmem>>, vector<1x1x128xf32>
      %28 = vector.shape_cast %27 : vector<1x1x128xf32> to vector<1x128xf32>
      %29 = vector.shape_cast %26 : vector<1x128xf32> to vector<1x1x128xf32>
      tpu.vector_store %arg7[%c0_22, %c0_23, %c0_24], %29 {strides = array<i32>} : memref<1x1x128xf32, #tpu.memory_space<vmem>>, vector<1x1x128xf32>,
    } else {
    }
    return
  }
  func.func @transform_0(%arg0: i32, %arg1: i32) -> (i32, i32, i32) {
    %c0_i32 = arith.constant 0 : i32
    %c0_i32_0 = arith.constant 0 : i32
    return %arg0, %arg1, %c0_i32 : i32, i32, i32
  }
  func.func @transform_1(%arg0: i32, %arg1: i32) -> (i32, i32) {
    %c0_i32 = arith.constant 0 : i32
    %c0_i32_0 = arith.constant 0 : i32
    %c0_i32_1 = arith.constant 0 : i32
    return %c0_i32, %c0_i32_0 : i32, i32
  }
  func.func @transform_2(%arg0: i32, %arg1: i32) -> (i32, i32) {
    %c0_i32 = arith.constant 0 : i32
    %c0_i32_0 = arith.constant 0 : i32
    %c0_i32_1 = arith.constant 0 : i32
    return %c0_i32, %c0_i32_0 : i32, i32
  }
  func.func @transform_3(%arg0: i32, %arg1: i32) -> (i32, i32) {
    %c0_i32 = arith.constant 0 : i32
    %c0_i32_0 = arith.constant 0 : i32
    %c0_i32_1 = arith.constant 0 : i32
    return %c0_i32, %c0_i32_0 : i32, i32
  }
  func.func @transform_4(%arg0: i32, %arg1: i32) -> (i32, i32) {
    %c0_i32 = arith.constant 0 : i32
    %c0_i32_0 = arith.constant 0 : i32
    %c0_i32_1 = arith.constant 0 : i32
    return %c0_i32, %c0_i32_0 : i32, i32
  }
  func.func @transform_5(%arg0: i32, %arg1: i32) -> (i32, i32, i32) {
    %c0_i32 = arith.constant 0 : i32
    %c0_i32_0 = arith.constant 0 : i32
    %c0_i32_1 = arith.constant 0 : i32
    return %arg0, %c0_i32, %c0_i32_0 : i32, i32, i32
  }
}

</mosaic_0001>

<llo_original>
// kernel: tpu_custom_call.1
$region0: #{tpu_custom_call.1}
  #allocation0 [shape = 'u32[]', space=smem, size = 0x4, offset = 0x4, fixed_abs, tag = 'smem constant byte address 0x4 - core index']
  #allocation1 [shape = 'u32[72,128]{1,0:T(1,128)}', space=vmem, size = 0x9000, scoped, tag = 'internal scratch']
  #allocation2 [shape = 'f32[1,128]{1,0:T(1,128)}', space=vmem, size = 0x200, scoped, tag = 'scratch operand']
  %s0 = inlined_call_operand.vmem [shape: bf16[2,128,32], index: 0, kind: input, shape index: {}]
  %s1 = inlined_call_operand.vmem [shape: bf16[32,128], index: 1, kind: input, shape index: {}]
  %s2 = inlined_call_operand.vmem [shape: f32[1,128], index: 2, kind: input, shape index: {}]
  %s3 = inlined_call_operand.vmem [shape: f32[128,128], index: 3, kind: input, shape index: {}]
  %s4 = inlined_call_operand.vmem [shape: f32[1,128], index: 4, kind: input, shape index: {}]
  %s5 = inlined_call_operand.hbm [shape: f32[2,1,128], index: 5, kind: output, shape index: {}]
  %s6 = sld [smem:[#allocation0]]
  $region61: #{tpu_custom_call.1} parent=0
    _
  %s8 = ssub.s32 1, %s6
  %s9 = scalar_select 0, %s8, %s6
  $region1: #{tpu_custom_call.1} parent=0
    #allocation3 [shape = 'u8[1024]{0}', space=vmem, size = 0x400, scoped, tag = 'output window, operand 0']
    #allocation4 [shape = 's32[2]{0}', space=sflag, size = 0x8, scoped, tag = 'scoped memory for tpu_custom_call.1']
    %10 = vsyncpa [#allocation4], 0
    %s11 = scalar_lea.sflag [#allocation4], 1
    %12 = vsyncpa %s11, 0
    loop: start=0, step=1, limit=6
    $region2: #{tpu_custom_call.1} parent=1 // loop_pre_header
      _
    $region3: #{tpu_custom_call.1} parent=1 // loop_header
      %s14 = sphi 0, %s18
      %p15 = scmp.ge.s32.totalorder %s14, 6
      %s21 = sphi 0, %s33
      %s22 = sphi 0, %s29
      %s23 = sphi 0, %s21
      %s24 = sphi 0, %s22
      %s25 = sphi 0, %s23
      %s26 = sphi 0, %s24
      %s38 = sphi 0, %s40
      %s41 = sphi 0, %s38
      %s42 = sphi 0, %s41
      %s58 = sphi 0, %s42
      %s62 = sphi 0, %s62
      %s64 = sphi 0, %s62
      %s65 = sphi 0, %s64
      %s79 = sphi 0, %s65
      %s83 = sphi 0, %s83
      %s85 = sphi 0, %s83
      %s86 = sphi 0, %s85
      %s100 = sphi 0, %s86
      %s104 = sphi 0, %s104
      %s106 = sphi 0, %s104
      %s107 = sphi 0, %s106
      %s121 = sphi 0, %s107
      %s125 = sphi 0, %s125
      %s127 = sphi 0, %s125
      %s128 = sphi 0, %s127
      %s142 = sphi 0, %s128
      %s148 = sphi 0, %s150
      %s151 = sphi 0, %s148
      %s152 = sphi 0, %s151
      %s168 = sphi 0, %s152
    $region4: #{tpu_custom_call.1} parent=1 // loop_header_branch
      %17 = sbr.rel (%p15) target = $region8
    $region5: #{tpu_custom_call.1} parent=1 // loop_body
      %s19 = ssub.s32 %s14, 1
      %s20 = ssub.s32 %s14, 2
      %s27 = sadd.s32 1, %s22
      %p28 = scmp.ge.s32.totalorder %s27, 2
      %s29 = scalar_select %p28, 0, %s27
      %s30 = sadd.s32 1, %s21
      %s31 = scalar_select %p28, %s30, %s21
      %p32 = scmp.ge.s32.totalorder %s31, 2
      %s33 = scalar_select %p32, 0, %s31
      %s34 = ssub.s32 %s21, %s33
      %s35 = ssub.s32 %s22, %s29
      %s36 = sor.u32 %s34, %s35
      %p37 = scmp.eq.s32.totalorder %s36, 0
      %s39 = sadd.s32 %s38, 1
      %s40 = scalar_select %p37, %s38, %s39
      %p43 = pneg %p37
      %p44 = scmp.eq.s32.totalorder %s14, 3
      %p45 = por %p43, %p44
      %p46 = scmp.ne.s32.totalorder %s38, %s41
      %p47 = scmp.eq.s32.totalorder %s14, 0
      %p48 = por %p46, %p47
      %p49 = scmp.ne.s32.totalorder %s38, %s41
      %p50 = scmp.eq.s32.totalorder %s19, 3
      %p51 = por %p49, %p50
      %p52 = scmp.ne.s32.totalorder %s41, %s42
      %p53 = scmp.eq.s32.totalorder %s19, 0
      %p54 = por %p52, %p53
      %p55 = scmp.ne.s32.totalorder %s41, %s42
      %p56 = scmp.eq.s32.totalorder %s20, 3
      %p57 = por %p55, %p56
      %p59 = scmp.ne.s32.totalorder %s42, %s58
      %p60 = scmp.eq.s32.totalorder %s20, 0
      %p61 = por %p59, %p60
      %s63 = sadd.s32 %s62, 1
      %p66 = scmp.eq.s32.totalorder %s14, 3
      %p67 = scmp.ne.s32.totalorder %s62, %s64
      %p68 = scmp.eq.s32.totalorder %s14, 0
      %p69 = por %p67, %p68
      %p70 = scmp.ne.s32.totalorder %s62, %s64
      %p71 = scmp.eq.s32.totalorder %s19, 3
      %p72 = por %p70, %p71
      %p73 = scmp.ne.s32.totalorder %s64, %s65
      %p74 = scmp.eq.s32.totalorder %s19, 0
      %p75 = por %p73, %p74
      %p76 = scmp.ne.s32.totalorder %s64, %s65
      %p77 = scmp.eq.s32.totalorder %s20, 3
      %p78 = por %p76, %p77
      %p80 = scmp.ne.s32.totalorder %s65, %s79
      %p81 = scmp.eq.s32.totalorder %s20, 0
      %p82 = por %p80, %p81
      %s84 = sadd.s32 %s83, 1
      %p87 = scmp.eq.s32.totalorder %s14, 3
      %p88 = scmp.ne.s32.totalorder %s83, %s85
      %p89 = scmp.eq.s32.totalorder %s14, 0
      %p90 = por %p88, %p89
      %p91 = scmp.ne.s32.totalorder %s83, %s85
      %p92 = scmp.eq.s32.totalorder %s19, 3
      %p93 = por %p91, %p92
      %p94 = scmp.ne.s32.totalorder %s85, %s86
      %p95 = scmp.eq.s32.totalorder %s19, 0
      %p96 = por %p94, %p95
      %p97 = scmp.ne.s32.totalorder %s85, %s86
      %p98 = scmp.eq.s32.totalorder %s20, 3
      %p99 = por %p97, %p98
      %p101 = scmp.ne.s32.totalorder %s86, %s100
      %p102 = scmp.eq.s32.totalorder %s20, 0
      %p103 = por %p101, %p102
      %s105 = sadd.s32 %s104, 1
      %p108 = scmp.eq.s32.totalorder %s14, 3
      %p109 = scmp.ne.s32.totalorder %s104, %s106
      %p110 = scmp.eq.s32.totalorder %s14, 0
      %p111 = por %p109, %p110
      %p112 = scmp.ne.s32.totalorder %s104, %s106
      %p113 = scmp.eq.s32.totalorder %s19, 3
      %p114 = por %p112, %p113
      %p115 = scmp.ne.s32.totalorder %s106, %s107
      %p116 = scmp.eq.s32.totalorder %s19, 0
      %p117 = por %p115, %p116
      %p118 = scmp.ne.s32.totalorder %s106, %s107
      %p119 = scmp.eq.s32.totalorder %s20, 3
      %p120 = por %p118, %p119
      %p122 = scmp.ne.s32.totalorder %s107, %s121
      %p123 = scmp.eq.s32.totalorder %s20, 0
      %p124 = por %p122, %p123
      %s126 = sadd.s32 %s125, 1
      %p129 = scmp.eq.s32.totalorder %s14, 3
      %p130 = scmp.ne.s32.totalorder %s125, %s127
      %p131 = scmp.eq.s32.totalorder %s14, 0
      %p132 = por %p130, %p131
      %p133 = scmp.ne.s32.totalorder %s125, %s127
      %p134 = scmp.eq.s32.totalorder %s19, 3
      %p135 = por %p133, %p134
      %p136 = scmp.ne.s32.totalorder %s127, %s128
      %p137 = scmp.eq.s32.totalorder %s19, 0
      %p138 = por %p136, %p137
      %p139 = scmp.ne.s32.totalorder %s127, %s128
      %p140 = scmp.eq.s32.totalorder %s20, 3
      %p141 = por %p139, %p140
      %p143 = scmp.ne.s32.totalorder %s128, %s142
      %p144 = scmp.eq.s32.totalorder %s20, 0
      %p145 = por %p143, %p144
      %s146 = ssub.s32 %s21, %s33
      %p147 = scmp.eq.s32.totalorder %s146, 0
      %s149 = sadd.s32 %s148, 1
      %s150 = scalar_select %p147, %s148, %s149
      %p153 = pneg %p147
      %p154 = scmp.eq.s32.totalorder %s14, 3
      %p155 = por %p153, %p154
      %p156 = scmp.ne.s32.totalorder %s148, %s151
      %p157 = scmp.eq.s32.totalorder %s14, 0
      %p158 = por %p156, %p157
      %p159 = scmp.ne.s32.totalorder %s148, %s151
      %p160 = scmp.eq.s32.totalorder %s19, 3
      %p161 = por %p159, %p160
      %p162 = scmp.ne.s32.totalorder %s151, %s152
      %p163 = scmp.eq.s32.totalorder %s19, 0
      %p164 = por %p162, %p163
      %p165 = scmp.ne.s32.totalorder %s151, %s152
      %p166 = scmp.eq.s32.totalorder %s20, 3
      %p167 = por %p165, %p166
      %p169 = scmp.ne.s32.totalorder %s152, %s168
      %p170 = scmp.eq.s32.totalorder %s20, 0
      %p171 = por %p169, %p170
      %p172 = scmp.le.s32.totalorder 1, %s14
      %p173 = scmp.lt.s32.totalorder %s14, 5
      %p174 = pnand %p172, %p173
      %p175 = pneg %p174
      // Predicated region
      $region9: #{tpu_custom_call.1} parent=5 // pred_check
        _
      $region10: #{tpu_custom_call.1} parent=5 // pred_check_branch
        %177 = sbr.rel (%p174) target = $region12
      $region11: #{tpu_custom_call.1} parent=5 // pred_region
        %s178 = ssub.s32 %s14, 1
        // Predicated region
        $region13: #{tpu_custom_call.1} parent=11 // pred_check
          %p179 = pneg %p75
        $region14: #{tpu_custom_call.1} parent=11 // pred_check_branch
          %181 = sbr.rel (%p179) target = $region16
        $region15: #{tpu_custom_call.1} parent=11 // pred_region
          _
        $region16: #{tpu_custom_call.1} parent=11 // pred_fallthru
          _
        // Predicated region
        $region17: #{tpu_custom_call.1} parent=11 // pred_check
          %p182 = pneg %p96
        $region18: #{tpu_custom_call.1} parent=11 // pred_check_branch
          %184 = sbr.rel (%p182) target = $region20
        $region19: #{tpu_custom_call.1} parent=11 // pred_region
          _
        $region20: #{tpu_custom_call.1} parent=11 // pred_fallthru
          _
        // Predicated region
        $region21: #{tpu_custom_call.1} parent=11 // pred_check
          %p185 = pneg %p117
        $region22: #{tpu_custom_call.1} parent=11 // pred_check_branch
          %187 = sbr.rel (%p185) target = $region24
        $region23: #{tpu_custom_call.1} parent=11 // pred_region
          _
        $region24: #{tpu_custom_call.1} parent=11 // pred_fallthru
          _
        // Predicated region
        $region25: #{tpu_custom_call.1} parent=11 // pred_check
          %p188 = pneg %p138
        $region26: #{tpu_custom_call.1} parent=11 // pred_check_branch
          %190 = sbr.rel (%p188) target = $region28
        $region27: #{tpu_custom_call.1} parent=11 // pred_region
          _
        $region28: #{tpu_custom_call.1} parent=11 // pred_fallthru
          _
      $region12: #{tpu_custom_call.1} parent=5 // pred_fallthru
        _
      %p191 = scmp.lt.s32.totalorder %s14, 4
      // Predicated region
      $region29: #{tpu_custom_call.1} parent=5 // pred_check
        %p192 = pneg %p191
      $region30: #{tpu_custom_call.1} parent=5 // pred_check_branch
        %194 = sbr.rel (%p192) target = $region32
      $region31: #{tpu_custom_call.1} parent=5 // pred_region
        // Predicated region
        $region33: #{tpu_custom_call.1} parent=31 // pred_check
          %p195 = pneg %p48
        $region34: #{tpu_custom_call.1} parent=31 // pred_check_branch
          %197 = sbr.rel (%p195) target = $region36
        $region35: #{tpu_custom_call.1} parent=31 // pred_region
          %s198 = smul.u32 8, %s22
          %p199 = scmp.lt.s32.totalorder %s21, 1
          %s200 = scalar_select %p199, %s21, 1
          %p201 = scmp.lt.s32.totalorder %s198, 15
          %s202 = scalar_select %p201, %s198, 15
          %s203 = smul.addr %s200, 16
          %s204 = sadd.s32 %s202, %s203
          %s205 = smul.addr %s204, 4
          %s206 = scalar_lea.vmem %s0, %s205
          %s207 = smul.u32 8, %s22
        $region36: #{tpu_custom_call.1} parent=31 // pred_fallthru
          _
      $region32: #{tpu_custom_call.1} parent=5 // pred_fallthru
        _
      %p208 = scmp.le.s32.totalorder 1, %s14
      %p209 = scmp.lt.s32.totalorder %s14, 5
      %p210 = pnand %p208, %p209
      %p211 = pneg %p210
      // Predicated region
      $region37: #{tpu_custom_call.1} parent=5 // pred_check
        _
      $region38: #{tpu_custom_call.1} parent=5 // pred_check_branch
        %213 = sbr.rel (%p210) target = $region40
      $region39: #{tpu_custom_call.1} parent=5 // pred_region
        %s214 = ssub.s32 %s14, 1
        %s215 = smul.u32 8, %s24
        %p216 = scmp.lt.s32.totalorder %s23, 1
        %s217 = scalar_select %p216, %s23, 1
        %p218 = scmp.lt.s32.totalorder %s215, 15
        %s219 = scalar_select %p218, %s215, 15
        %s220 = smul.addr %s217, 16
        %s221 = sadd.s32 %s219, %s220
        %s222 = smul.addr %s221, 4
        %s223 = scalar_lea.vmem %s0, %s222
        %p224 = pneg %p54
        %p225 = pneg %p51
        %p226 = pneg %p75
        %p227 = pneg %p72
        %p228 = pneg %p96
        %p229 = pneg %p93
        %p230 = pneg %p117
        %p231 = pneg %p114
        %p232 = pneg %p138
        %p233 = pneg %p135
        %p234 = pneg %p164
        %p235 = pneg %p161
        %s236 = sand.u32 %s151, 1
        %s237 = scalar_lea.sflag [#allocation4], %s236
        %s238 = sand.u32 %s151, 1
        %s239 = scalar_lea.vmem [#allocation3], %s238
        %s240 = smul.u32 8, %s24
        %p241 = scmp.lt.s32.totalorder %s23, 1
        %s242 = scalar_select %p241, %s23, 1
        %p243 = scmp.lt.s32.totalorder %s240, 15
        %s244 = scalar_select %p243, %s240, 15
        %s245 = smul.addr %s242, 16
        %s246 = sadd.s32 %s244, %s245
        %s247 = smul.addr %s246, 4
        %s248 = scalar_lea.vmem %s0, %s247
        %s249 = smul.u32 8, %s24
        %p251 = scmp.eq.s32.totalorder %s24, 0
        // Predicated region
        $region41: #{tpu_custom_call.1} parent=39 // pred_check
          %p252 = pneg %p251
        $region42: #{tpu_custom_call.1} parent=39 // pred_check_branch
          %254 = sbr.rel (%p252) target = $region44
        $region43: #{tpu_custom_call.1} parent=39 // pred_region
          %255 = vst [vmem:[#allocation2] sm:$0x1] 0.0
        $region44: #{tpu_custom_call.1} parent=39 // pred_fallthru
          _
        %v256 = vld [vmem:[%s248] sm:$0xf]
        %v257 = vld [vmem:[%s248 + $0x4] sm:$0xf]
        %v258 = vld [vmem:[%s248 + $0x8] sm:$0xf]
        %v259 = vld [vmem:[%s248 + $0xc] sm:$0xf]
        %v260 = vld [vmem:[%s248 + $0x10] sm:$0xf]
        %v261 = vld [vmem:[%s248 + $0x14] sm:$0xf]
        %v262 = vld [vmem:[%s248 + $0x18] sm:$0xf]
        %v263 = vld [vmem:[%s248 + $0x1c] sm:$0xf]
        %v264 = vld [vmem:[%s1] sm:$0xf]
        %v265 = vld [vmem:[%s1 + $0x4] sm:$0xf]
        %v266 = vld [vmem:[%s1 + $0x8] sm:$0xf]
        %v267 = vld [vmem:[%s1 + $0xc] sm:$0xf]
        %v268 = vld [vmem:[%s2] sm:$0x1]
        %v270 = vperm.slane %v268, 0
        %v280 = vunpack.c.l.b16 %v256
        %v281 = vunpack.c.l.b16 %v257
        %v282 = vunpack.c.l.b16 %v258
        %v283 = vunpack.c.l.b16 %v259
        %v284 = vunpack.c.l.b16 %v260
        %v285 = vunpack.c.l.b16 %v261
        %v286 = vunpack.c.l.b16 %v262
        %v287 = vunpack.c.l.b16 %v263
        %v288 = vpack.c.b16 %v281, %v280
        %v289 = vpack.c.b16 %v283, %v282
        %v290 = vpack.c.b16 %v285, %v284
        %v291 = vpack.c.b16 %v287, %v286
        %v296 = vunpack.c.l.b16 %v264
        %v297 = vunpack.c.l.b16 %v265
        %v298 = vunpack.c.l.b16 %v266
        %v299 = vunpack.c.l.b16 %v267
        %v300 = vpack.c.b16 %v297, %v296
        %v301 = vpack.c.b16 %v299, %v298
        %vm304 = vcmask 261120
        %v306 = vsel %vm304, %v288, 0
        %v309 = vsel %vm304, %v289, 0
        %v312 = vsel %vm304, %v290, 0
        %v315 = vsel %vm304, %v291, 0
        %317 = vmatpush.bf16.msra.mxu0 0
        %318 = vmatpush.bf16.msra.mxu0 0
        %319 = vmatpush.bf16.msra.mxu0 0
        %320 = vmatpush.bf16.msra.mxu0 0
        %321 = vmatpush.bf16.msra.mxu0 0
        %322 = vmatpush.bf16.msra.mxu0 0
        %323 = vmatpush.bf16.msra.mxu0 %v301
        %324 = vmatpush.bf16.msra.mxu0 %v300
        %325 = vmatmul.bf16.gmra.mxu0 %v306
        %v326 = vpop.f32.mrf.mxu0
        %v327 = vadd.f32 %v270, %v326
        %v328 = vpop.f32.mrf.mxu0
        %v329 = vadd.f32 %v270, %v328
        %330 = vmatmul.bf16.gmra.mxu0 %v309
        %v331 = vpop.f32.mrf.mxu0
        %v332 = vadd.f32 %v270, %v331
        %v333 = vpop.f32.mrf.mxu0
        %v334 = vadd.f32 %v270, %v333
        %335 = vmatmul.bf16.gmra.mxu0 %v312
        %v336 = vpop.f32.mrf.mxu0
        %v337 = vadd.f32 %v270, %v336
        %v338 = vpop.f32.mrf.mxu0
        %v339 = vadd.f32 %v270, %v338
        %340 = vmatmul.bf16.gmra.mxu0 %v315
        %v341 = vpop.f32.mrf.mxu0
        %v342 = vadd.f32 %v270, %v341
        %v343 = vpop.f32.mrf.mxu0
        %v344 = vadd.f32 %v270, %v343
        %345 = vdwg.mxu0
        %v346 = vmax.f32 %v327, 0.0
        %v347 = vmax.f32 %v329, 0.0
        %v348 = vmax.f32 %v332, 0.0
        %v349 = vmax.f32 %v334, 0.0
        %v350 = vmax.f32 %v337, 0.0
        %v351 = vmax.f32 %v339, 0.0
        %v352 = vmax.f32 %v342, 0.0
        %v353 = vmax.f32 %v344, 0.0
        %v354 = vld [vmem:[#allocation2] sm:$0x1]
        %v355 = vadd.f32 %v346, %v347
        %v356 = vadd.f32 %v355, %v348
        %v357 = vadd.f32 %v356, %v349
        %v358 = vadd.f32 %v357, %v350
        %v359 = vadd.f32 %v358, %v351
        %v360 = vadd.f32 %v359, %v352
        %v361 = vadd.f32 %v360, %v353
        %v362 = vrot.slane %v361, 4
        %v363 = vadd.f32 %v361, %v362
        %v364 = vrot.slane %v363, 2
        %v365 = vadd.f32 %v363, %v364
        %v366 = vrot.slane %v365, 1
        %v367 = vadd.f32 %v365, %v366
        %v368 = vadd.f32 %v354, %v367
        %369 = vst [vmem:[#allocation2] sm:$0x1] %v368
        %p370 = scmp.eq.s32.totalorder %s24, 1
        // Predicated region
        $region45: #{tpu_custom_call.1} parent=39 // pred_check
          %p371 = pneg %p370
        $region46: #{tpu_custom_call.1} parent=39 // pred_check_branch
          %373 = sbr.rel (%p371) target = $region48
        $region47: #{tpu_custom_call.1} parent=39 // pred_region
          %v374 = vld [vmem:[#allocation2] sm:$0x1]
          %v375 = vmul.f32 %v374, 0.0078125
          %v376 = vld [vmem:[%s3] sm:$0xff]
          %v377 = vld [vmem:[%s3 + $0x8] sm:$0xff]
          %v378 = vld [vmem:[%s3 + $0x10] sm:$0xff]
          %v379 = vld [vmem:[%s3 + $0x18] sm:$0xff]
          %v380 = vld [vmem:[%s3 + $0x20] sm:$0xff]
          %v381 = vld [vmem:[%s3 + $0x28] sm:$0xff]
          %v382 = vld [vmem:[%s3 + $0x30] sm:$0xff]
          %v383 = vld [vmem:[%s3 + $0x38] sm:$0xff]
          %v384 = vld [vmem:[%s3 + $0x40] sm:$0xff]
          %v385 = vld [vmem:[%s3 + $0x48] sm:$0xff]
          %v386 = vld [vmem:[%s3 + $0x50] sm:$0xff]
          %v387 = vld [vmem:[%s3 + $0x58] sm:$0xff]
          %v388 = vld [vmem:[%s3 + $0x60] sm:$0xff]
          %v389 = vld [vmem:[%s3 + $0x68] sm:$0xff]
          %v390 = vld [vmem:[%s3 + $0x70] sm:$0xff]
          %v391 = vld [vmem:[%s3 + $0x78] sm:$0xff]
          %v392 = vld [vmem:[%s4] sm:$0x1]
          %393 = vmatpush.msra.mxu0 %v391
          %394 = vmatpush.msra.mxu0 %v390
          %395 = vmatpush.msra.mxu0 %v389
          %396 = vmatpush.msra.mxu0 %v388
          %397 = vmatpush.msra.mxu0 %v387
          %398 = vmatpush.msra.mxu0 %v386
          %399 = vmatpush.msra.mxu0 %v385
          %400 = vmatpush.msra.mxu0 %v384
          %401 = vmatpush.msra.mxu0 %v383
          %402 = vmatpush.msra.mxu0 %v382
          %403 = vmatpush.msra.mxu0 %v381
          %404 = vmatpush.msra.mxu0 %v380
          %405 = vmatpush.msra.mxu0 %v379
          %406 = vmatpush.msra.mxu0 %v378
          %407 = vmatpush.msra.mxu0 %v377
          %408 = vmatpush.msra.mxu0 %v376
          %409 = vmatmul.f32.gmra.mxu0 %v375
          %v410 = vpop.f32.mrf.mxu0
          %v411 = vadd.f32 %v392, %v410
          %412 = vdwg.mxu0
          %413 = vst [vmem:[%s239] sm:$0x1] %v411
        $region48: #{tpu_custom_call.1} parent=39 // pred_fallthru
          _
        %s414 = sand.u32 %s151, 1
        %s415 = scalar_lea.sflag [#allocation4], %s414
        %s416 = sand.u32 %s151, 1
        %s417 = scalar_lea.vmem [#allocation3], %s416
        // Predicated region
        $region49: #{tpu_custom_call.1} parent=39 // pred_check
          %p418 = pneg %p161
        $region50: #{tpu_custom_call.1} parent=39 // pred_check_branch
          %420 = sbr.rel (%p418) target = $region52
        $region51: #{tpu_custom_call.1} parent=39 // pred_region
          %422 = vsyncadd %s415, 0
          %s423 = scalar_lea.hbm %s5, %s23
          %s425 = sshll.u32 %s417, 4
          %s426 = int_to_ptr.vmem [resolvable:$true] %s425
          %s427 = sshll.u32 %s423, 4
          %s428 = int_to_ptr.hbm [resolvable:$true] %s427
          %430 = dma.vmem_to_hbm [thread:$0]  %s426, 16, %s428, %s415
        $region52: #{tpu_custom_call.1} parent=39 // pred_fallthru
          _
      $region40: #{tpu_custom_call.1} parent=5 // pred_fallthru
        _
      %p431 = scmp.le.s32.totalorder 2, %s14
      // Predicated region
      $region53: #{tpu_custom_call.1} parent=5 // pred_check
        %p432 = pneg %p431
      $region54: #{tpu_custom_call.1} parent=5 // pred_check_branch
        %434 = sbr.rel (%p432) target = $region56
      $region55: #{tpu_custom_call.1} parent=5 // pred_region
        %s435 = ssub.s32 %s14, 2
        // Predicated region
        $region57: #{tpu_custom_call.1} parent=55 // pred_check
          %p436 = pneg %p167
        $region58: #{tpu_custom_call.1} parent=55 // pred_check_branch
          %438 = sbr.rel (%p436) target = $region60
        $region59: #{tpu_custom_call.1} parent=55 // pred_region
          %s439 = sand.u32 %s152, 1
          %s440 = scalar_lea.sflag [#allocation4], %s439
          %s441 = sand.u32 %s152, 1
          %s442 = scalar_lea.vmem [#allocation3], %s441
          %444 = dma.done %s440, 16
        $region60: #{tpu_custom_call.1} parent=55 // pred_fallthru
          _
      $region56: #{tpu_custom_call.1} parent=5 // pred_fallthru
        _
    $region6: #{tpu_custom_call.1} parent=1 // loop_footer
      %s18 = sadd.s32 1, %s14
    $region7: #{tpu_custom_call.1} parent=1 // loop_footer_branch
      %13 = sbr.rel target = $region3
    $region8: #{tpu_custom_call.1} parent=1 // loop_exit
      _
    %445 = vsyncpa [#allocation4], 1
    %s446 = scalar_lea.sflag [#allocation4], 1
    %447 = vsyncpa %s446, 1

</llo_original>
